<compile_context>
chip_gen: v7x
topology: tpu7x:2x2x1
jax: 0.10.0
libtpu: 0.0.40
codegen_flags: <defaults>
</compile_context>

<pallas_src>
import functools

import jax
import jax.numpy as jnp
from jax.experimental import pallas as pl
from jax.experimental.pallas import tpu as pltpu


_NEG_INF = -1e30  # finite big-negative: identical softmax result for causal rows,
                  # but no NaN risk if a row were ever fully masked.


def _pick_tile(n, target):
    """Largest divisor of n that is a multiple of 8 and <= target (falls back to n).

    Refuses tiles < 32 (per-step overhead ~600 cycles) — awkward lengths fall
    back to the full extent instead of exploding the step count.
    """
    if n <= target:
        return n
    for t in range(target, 31, -8):
        if n % t == 0:
            return t
    return n


# --------------------------------------------------------------------------- #
# Kernel 1: per-head linear projection, emitted directly in head-major layout
#   out[b, h, s, :] = x[b, s, :] @ W[h] + bias[h]
# grid = (B, S//tm, H); h innermost so the x row-tile is DMA'd once per (b, s)
# and reused for all heads (its block index does not change across h).
# --------------------------------------------------------------------------- #
def _linear_kernel(x_ref, w_ref, b_ref, o_ref):
    acc = jnp.dot(x_ref[0], w_ref[0], preferred_element_type=jnp.float32)
    o_ref[0, 0] = (acc + b_ref[0]).astype(o_ref.dtype)


def _linear_heads(x3d, w3, b3, *, out_dtype, row_tile=256):
    B, S, Din = x3d.shape
    H, _, d = w3.shape
    tm = _pick_tile(S, row_tile)   # 256 keeps the x tile within v5e's 16 MiB scoped VMEM
    return pl.pallas_call(
        _linear_kernel,
        out_shape=jax.ShapeDtypeStruct((B, H, S, d), out_dtype),
        grid=(B, S // tm, H),
        in_specs=[
            pl.BlockSpec((1, tm, Din), lambda b, s, h: (b, s, 0)),   # reused across h
            pl.BlockSpec((1, Din, d), lambda b, s, h: (h, 0, 0)),    # per-head weight slice
            pl.BlockSpec((1, 1, d), lambda b, s, h: (h, 0, 0)),      # per-head bias
        ],
        out_specs=pl.BlockSpec((1, 1, tm, d), lambda b, s, h: (b, h, s, 0)),
        compiler_params=pltpu.CompilerParams(
            dimension_semantics=("parallel", "parallel", "parallel")),
    )(x3d, w3, b3)


# --------------------------------------------------------------------------- #
# Kernel 2: flash-style attention + fused per-head output projection
# grid = (batch, q_tiles, heads, kv_tiles); output block resident across (h, kv)
# --------------------------------------------------------------------------- #
def _flash_mha_kernel(add_mask, approx_recip,
                      q_ref, k_ref, v_ref, wo_ref, bo_ref, out_ref,
                      m_sc, l_sc, acc_sc, oacc_sc):
    qi = pl.program_id(1)
    h = pl.program_id(2)
    ki = pl.program_id(3)
    nh = pl.num_programs(2)
    nk = pl.num_programs(3)
    tq = q_ref.shape[2]
    tk = k_ref.shape[2]

    # Zero the fused output-projection accumulator once per (batch, q-tile).
    @pl.when(jnp.logical_and(h == 0, ki == 0))
    def _():
        oacc_sc[...] = jnp.zeros_like(oacc_sc)

    # Reset online-softmax state once per (batch, q-tile, head).
    @pl.when(ki == 0)
    def _():
        m_sc[...] = jnp.full_like(m_sc, -jnp.inf)
        l_sc[...] = jnp.zeros_like(l_sc)
        acc_sc[...] = jnp.zeros_like(acc_sc)

    def update(masked):
        q = q_ref[0, 0]            # 1/sqrt(dim_q) already folded into W_q / b_q
        k = k_ref[0, 0]
        v = v_ref[0, 0]
        # Contract the last dims directly -> no explicit k.T (no XLU transpose).
        s = jax.lax.dot_general(q, k, (((1,), (1,)), ((), ())),
                                preferred_element_type=jnp.float32)   # (tq, tk) f32
        if masked:
            q_pos = qi * tq + jax.lax.broadcasted_iota(jnp.int32, (tq, tk), 0)
            k_pos = ki * tk + jax.lax.broadcasted_iota(jnp.int32, (tq, tk), 1)
            s = jnp.where(q_pos >= k_pos, s, _NEG_INF)
        m_prev = m_sc[...]
        m_new = jnp.maximum(m_prev, jnp.max(s, axis=-1, keepdims=True))
        alpha = jnp.exp(m_prev - m_new)
        p = jnp.exp(s - m_new)
        l_sc[...] = alpha * l_sc[...] + jnp.sum(p, axis=-1, keepdims=True)
        acc_sc[...] = alpha * acc_sc[...] + jnp.dot(
            p.astype(v.dtype), v, preferred_element_type=jnp.float32)
        m_sc[...] = m_new

    if add_mask:
        # processed: kv tile not entirely above the diagonal of this q tile.
        processed = ki * tk <= qi * tq + (tq - 1)
        # diagonal: kv tile straddles the diagonal -> needs the iota/select mask.
        diagonal = ki * tk + (tk - 1) > qi * tq

        @pl.when(jnp.logical_and(processed, diagonal))
        def _():
            update(masked=True)

        # Fully below the diagonal (always processed): no mask VPU work at all.
        @pl.when(jnp.logical_not(diagonal))
        def _():
            update(masked=False)
    else:
        update(masked=False)

    # Per-head epilogue: normalize and apply this head's slice of W_o, summing
    # across heads (replaces head concat + one big matmul).  W_o for ALL heads
    # is VMEM-resident (constant block index); slice it here.
    @pl.when(ki == nk - 1)
    def _():
        wo_h = wo_ref[h]                                              # (dk, dim_in)
        ctx = acc_sc[...] * pl.reciprocal(l_sc[...], approx=approx_recip)
        oacc_sc[...] += jnp.dot(ctx.astype(wo_h.dtype), wo_h,
                                preferred_element_type=jnp.float32)

    @pl.when(jnp.logical_and(h == nh - 1, ki == nk - 1))
    def _():
        out_ref[0] = (oacc_sc[...] + bo_ref[...]).astype(out_ref.dtype)


def _flash_attention(q4, k4, v4, wo3, bo2, *, add_mask, approx_recip, out_dtype, tq, tk):
    B, H, Sq, dq = q4.shape
    _, _, Skv, dk = k4.shape
    dim_in = wo3.shape[-1]
    nq = Sq // tq
    nk = Skv // tk

    if add_mask:
        # Clamp the kv block index so fully-masked kv tiles repeat the previous
        # block index -> Pallas skips their DMA entirely.
        def kv_map(b, qi, h, ki):
            last = (qi * tq + (tq - 1)) // tk
            return (b, h, jnp.minimum(ki, last), 0)
    else:
        def kv_map(b, qi, h, ki):
            return (b, h, ki, 0)

    itemsize = jnp.dtype(q4.dtype).itemsize
    causal = 0.5 if add_mask else 1.0
    kv_bytes = 2.0 * B * nq * H * Skv * dk * causal * itemsize   # K and V, per (b, q-tile, h)
    cost = pl.CostEstimate(
        flops=int(2 * B * H * Sq * Skv * (dq + dk) * causal + 2 * B * H * Sq * dk * dim_in),
        transcendentals=int(B * H * Sq * Skv * causal),
        bytes_accessed=int(itemsize * (q4.size + wo3.size) + kv_bytes
                           + 4 * (bo2.size + B * Sq * dim_in)),
    )

    kernel = functools.partial(_flash_mha_kernel, add_mask, approx_recip)

    return pl.pallas_call(
        kernel,
        out_shape=jax.ShapeDtypeStruct((B, Sq, dim_in), out_dtype),
        grid=(B, nq, H, nk),
        in_specs=[
            pl.BlockSpec((1, 1, tq, dq), lambda b, qi, h, ki: (b, h, qi, 0)),
            pl.BlockSpec((1, 1, tk, dk), kv_map),
            pl.BlockSpec((1, 1, tk, dk), kv_map),
            # All heads of W_o resident in VMEM: constant block index -> one DMA total.
            pl.BlockSpec((H, dk, dim_in), lambda b, qi, h, ki: (0, 0, 0)),
            pl.BlockSpec((1, dim_in), lambda b, qi, h, ki: (0, 0)),
        ],
        out_specs=pl.BlockSpec((1, tq, dim_in), lambda b, qi, h, ki: (b, qi, 0)),
        scratch_shapes=[
            pltpu.VMEM((tq, 1), jnp.float32),        # running max m
            pltpu.VMEM((tq, 1), jnp.float32),        # running denom l
            pltpu.VMEM((tq, dk), jnp.float32),       # per-head context accumulator
            pltpu.VMEM((tq, dim_in), jnp.float32),   # fused output-projection accumulator
        ],
        compiler_params=pltpu.CompilerParams(
            dimension_semantics=("parallel", "parallel", "arbitrary", "arbitrary")),
        cost_estimate=cost,
    )(q4, k4, v4, wo3, bo2)


# --------------------------------------------------------------------------- #
# Public wrapper
# --------------------------------------------------------------------------- #
def multi_head_attention(query, key, value, params, *, add_mask, matmul_dtype=None):
    B, Sq, dim_in = query.shape
    _, Skv, _ = key.shape
    H, _, dim_q = params["wq"].shape
    dim_k = params["wk"].shape[-1]
    assert dim_q == dim_k, "Q.K^T in the reference module requires dim_q == dim_k"

    out_dtype = query.dtype
    cdt = jnp.dtype(matmul_dtype) if matmul_dtype is not None else jnp.dtype(query.dtype)
    approx_recip = (cdt == jnp.bfloat16)   # EUP approx reciprocal only on the bf16 path

    # Fold 1/sqrt(dim_q) into the Q projection, in f32, BEFORE any bf16 cast.
    inv_scale = float(dim_q) ** -0.5
    wq = (params["wq"] * inv_scale).astype(cdt)                      # (H, dim_in, dim_q)
    bq = (params["bq"] * inv_scale).reshape(H, 1, dim_q).astype(jnp.float32)
    wk = params["wk"].astype(cdt)
    bk = params["bk"].reshape(H, 1, dim_k).astype(jnp.float32)
    wv = params["wv"].astype(cdt)
    bv = params["bv"].reshape(H, 1, dim_k).astype(jnp.float32)

    # Head-major projections: (B, H, S, d) written directly by the kernel —
    # no wrapper-side transposes (each was a full HBM read+write).
    q4 = _linear_heads(query.astype(cdt), wq, bq, out_dtype=cdt)
    k4 = _linear_heads(key.astype(cdt), wk, bk, out_dtype=cdt)
    v4 = _linear_heads(value.astype(cdt), wv, bv, out_dtype=cdt)

    wo3 = params["wo"].reshape(H, dim_k, dim_in).astype(cdt)   # head-h slice of W_o
    bo2 = params["bo"].astype(jnp.float32)                     # (1, dim_in)

    # Smaller q tile keeps the live (tq, tk) f32 score tile off the spill path;
    # tk=256 keeps K/V streaming lane-dense.
    tq = _pick_tile(Sq, 128)
    tk = _pick_tile(Skv, 256)
    # v7x: keep B * num_q_tiles >= 2 so both TensorCores get work on the
    # parallel grid axes.
    while B * (Sq // tq) < 2:
        nt = _pick_tile(Sq, max(tq // 2, 8))
        if nt >= tq:
            break
        tq = nt

    return _flash_attention(q4, k4, v4, wo3, bo2,
                            add_mask=add_mask, approx_recip=approx_recip,
                            out_dtype=out_dtype, tq=tq, tk=tk)


# --------------------------------------------------------------------------- #
# Params + pure-JAX reference (mirrors the PyTorch forward)
# --------------------------------------------------------------------------- #
def init_params(rng, num_heads, dim_in, dim_q, dim_k):
    """Deterministic nn.Linear-style uniform init (U[-1/sqrt(fan_in), 1/sqrt(fan_in)])."""
    ks = jax.random.split(rng, 8)

    def u(k, fan_in, shape):
        bound = 1.0 / (fan_in ** 0.5)
        return jax.random.uniform(k, shape, jnp.float32, -bound, bound)

    return {
        "wq": u(ks[0], dim_in, (num_heads, dim_in, dim_q)),
        "bq": u(ks[1], dim_in, (num_heads, dim_q)),
        "wk": u(ks[2], dim_in, (num_heads, dim_in, dim_k)),
        "bk": u(ks[3], dim_in, (num_heads, dim_k)),
        "wv": u(ks[4], dim_in, (num_heads, dim_in, dim_k)),
        "bv": u(ks[5], dim_in, (num_heads, dim_k)),
        "wo": u(ks[6], num_heads * dim_k, (num_heads * dim_k, dim_in)),
        "bo": u(ks[7], num_heads * dim_k, (1, dim_in)),
    }


def reference(query, key, value, params, *, add_mask):
    H = params["wq"].shape[0]
    dim_q = params["wq"].shape[-1]
    outs = []
    for h in range(H):
        q = query @ params["wq"][h] + params["bq"][h]
        k = key @ params["wk"][h] + params["bk"][h]
        v = value @ params["wv"][h] + params["bv"][h]
        scores = jnp.einsum("bqd,bkd->bqk", q, k)
        if add_mask:
            S = scores.shape[-1]
            mask = jnp.where(jnp.tril(jnp.ones((S, S), dtype=bool)), 0.0, -jnp.inf)
            scores = scores + mask
        attn = jax.nn.softmax(scores / (float(dim_q) ** 0.5), axis=-1)
        outs.append(jnp.einsum("bqk,bkd->bqd", attn, v))
    concat = jnp.concatenate(outs, axis=-1)
    return concat @ params["wo"] + params["bo"][0]


if __name__ == "__main__":
    B, S, dim_in, dim_q, dim_k, H = 2, 8, 32, 16, 16, 2

    root = jax.random.PRNGKey(0)
    kq, kk, kv, kp = jax.random.split(root, 4)
    query = jax.random.normal(kq, (B, S, dim_in), jnp.float32)
    key_t = jax.random.normal(kk, (B, S, dim_in), jnp.float32)
    value = jax.random.normal(kv, (B, S, dim_in), jnp.float32)
    params = init_params(kp, H, dim_in, dim_q, dim_k)

    # f32 path, causal mask on (matches the PyTorch module numerics)
    out = multi_head_attention(query, key_t, value, params, add_mask=True)
    out = jax.block_until_ready(out)
    ref = reference(query, key_t, value, params, add_mask=True)
    assert out.shape == (B, S, dim_in), out.shape
    assert jnp.allclose(out, ref, atol=1e-4, rtol=1e-4), float(jnp.max(jnp.abs(out - ref)))

    # f32 path, no mask
    out_nm = jax.block_until_ready(
        multi_head_attention(query, key_t, value, params, add_mask=False))
    ref_nm = reference(query, key_t, value, params, add_mask=False)
    assert jnp.allclose(out_nm, ref_nm, atol=1e-4, rtol=1e-4), \
        float(jnp.max(jnp.abs(out_nm - ref_nm)))

    # bf16 MXU path (f32 accumulation / f32 softmax) — looser tolerance
    out_bf = jax.block_until_ready(
        multi_head_attention(query, key_t, value, params, add_mask=True,
                             matmul_dtype=jnp.bfloat16))
    assert float(jnp.max(jnp.abs(out_bf.astype(jnp.float32) - ref))) < 1e-1

    print("KERNEL_OK")
</pallas_src>

<mosaic_0001>
module attributes {stable_mosaic.version = 11 : i64} {
  func.func @_linear_kernel(%arg0: i32, %arg1: i32, %arg2: i32, %arg3: memref<1x8x32xf32, #tpu.memory_space<vmem>>, %arg4: memref<1x32x16xf32, #tpu.memory_space<vmem>>, %arg5: memref<1x1x16xf32, #tpu.memory_space<vmem>>, %arg6: memref<1x1x8x16xf32, #tpu.memory_space<vmem>>) attributes {dimension_semantics = [#tpu.dimension_semantics<parallel>, #tpu.dimension_semantics<parallel>, #tpu.dimension_semantics<parallel>], iteration_bounds = array<i64: 2, 1, 2>, scalar_prefetch = 0 : i64, scratch_operands = 0 : i64, tpu.core_type = #tpu.core_type<tc>, window_params = [{transform_indices = @transform_0, window_bounds = array<i64: 1, 8, 32>}, {transform_indices = @transform_1, window_bounds = array<i64: 1, 32, 16>}, {transform_indices = @transform_2, window_bounds = array<i64: 1, 1, 16>}, {transform_indices = @transform_3, window_bounds = array<i64: 1, 1, 8, 16>}]} {
    %c0 = arith.constant 0 : index
    %c0_0 = arith.constant 0 : index
    %c0_1 = arith.constant 0 : index
    %0 = vector.load %arg3[%c0, %c0_0, %c0_1] : memref<1x8x32xf32, #tpu.memory_space<vmem>>, vector<1x8x32xf32>
    %1 = vector.shape_cast %0 : vector<1x8x32xf32> to vector<8x32xf32>
    %c0_2 = arith.constant 0 : index
    %c0_3 = arith.constant 0 : index
    %c0_4 = arith.constant 0 : index
    %2 = vector.load %arg4[%c0_2, %c0_3, %c0_4] : memref<1x32x16xf32, #tpu.memory_space<vmem>>, vector<1x32x16xf32>
    %3 = vector.shape_cast %2 : vector<1x32x16xf32> to vector<32x16xf32>
    %cst = arith.constant dense<0.000000e+00> : vector<8x16xf32>
    %4 = tpu.matmul %1, %3, %cst {dimension_numbers = #tpu.dot_dimension_numbers<[1], [0], [0], [1], [0, 0, 1, 1], [], []>} : vector<8x32xf32>, vector<32x16xf32>, vector<8x16xf32> -> vector<8x16xf32>
    %c0_5 = arith.constant 0 : index
    %c0_6 = arith.constant 0 : index
    %c0_7 = arith.constant 0 : index
    %5 = vector.load %arg5[%c0_5, %c0_6, %c0_7] : memref<1x1x16xf32, #tpu.memory_space<vmem>>, vector<1x1x16xf32>
    %6 = vector.shape_cast %5 : vector<1x1x16xf32> to vector<1x16xf32>
    %7 = vector.broadcast %6 : vector<1x16xf32> to vector<8x16xf32>
    %8 = arith.addf %4, %7 : vector<8x16xf32>
    %c0_8 = arith.constant 0 : index
    %c0_9 = arith.constant 0 : index
    %c0_10 = arith.constant 0 : index
    %c0_11 = arith.constant 0 : index
    %9 = vector.load %arg6[%c0_8, %c0_9, %c0_10, %c0_11] : memref<1x1x8x16xf32, #tpu.memory_space<vmem>>, vector<1x1x8x16xf32>
    %10 = vector.shape_cast %9 : vector<1x1x8x16xf32> to vector<8x16xf32>
    %11 = vector.shape_cast %8 : vector<8x16xf32> to vector<1x1x8x16xf32>
    tpu.vector_store %arg6[%c0_8, %c0_9, %c0_10, %c0_11], %11 {strides = array<i32>} : memref<1x1x8x16xf32, #tpu.memory_space<vmem>>, vector<1x1x8x16xf32>,
    return
  }
  func.func @transform_0(%arg0: i32, %arg1: i32, %arg2: i32) -> (i32, i32, i32) {
    %c0_i32 = arith.constant 0 : i32
    %c0_i32_0 = arith.constant 0 : i32
    return %arg0, %arg1, %c0_i32 : i32, i32, i32
  }
  func.func @transform_1(%arg0: i32, %arg1: i32, %arg2: i32) -> (i32, i32, i32) {
    %c0_i32 = arith.constant 0 : i32
    %c0_i32_0 = arith.constant 0 : i32
    %c0_i32_1 = arith.constant 0 : i32
    return %arg2, %c0_i32, %c0_i32_0 : i32, i32, i32
  }
  func.func @transform_2(%arg0: i32, %arg1: i32, %arg2: i32) -> (i32, i32, i32) {
    %c0_i32 = arith.constant 0 : i32
    %c0_i32_0 = arith.constant 0 : i32
    %c0_i32_1 = arith.constant 0 : i32
    return %arg2, %c0_i32, %c0_i32_0 : i32, i32, i32
  }
  func.func @transform_3(%arg0: i32, %arg1: i32, %arg2: i32) -> (i32, i32, i32, i32) {
    %c0_i32 = arith.constant 0 : i32
    %c0_i32_0 = arith.constant 0 : i32
    return %arg0, %arg2, %arg1, %c0_i32 : i32, i32, i32, i32
  }
}

</mosaic_0001>

<llo_original>
// kernel: tpu_custom_call.1
$region0: #{tpu_custom_call.1}
  #allocation0 [shape = 'u32[]', space=smem, size = 0x4, offset = 0x4, fixed_abs, tag = 'smem constant byte address 0x4 - core index']
  #allocation1 [shape = 'u32[144,128]{1,0:T(1,128)}', space=vmem, size = 0x12000, scoped, tag = 'internal scratch']
  %s0 = inlined_call_operand.vmem [shape: f32[2,8,32], index: 0, kind: input, shape index: {}]
  %s1 = inlined_call_operand.vmem [shape: f32[2,32,16], index: 1, kind: input, shape index: {}]
  %s2 = inlined_call_operand.vmem [shape: f32[2,1,16], index: 2, kind: input, shape index: {}]
  %s3 = inlined_call_operand.hbm [shape: f32[2,2,8,16], index: 3, kind: output, shape index: {}]
  %s4 = sld [smem:[#allocation0]]
  $region45: #{tpu_custom_call.1} parent=0
    _
  %s6 = ssub.s32 1, %s4
  %s7 = scalar_select 0, %s6, %s4
  $region1: #{tpu_custom_call.1} parent=0
    #allocation2 [shape = 'u8[8192]{0}', space=vmem, size = 0x2000, scoped, tag = 'output window, operand 0']
    #allocation3 [shape = 's32[2]{0}', space=sflag, size = 0x8, scoped, tag = 'scoped memory for tpu_custom_call.1']
    %8 = vsyncpa [#allocation3], 0
    %s9 = scalar_lea.sflag [#allocation3], 1
    %10 = vsyncpa %s9, 0
    loop: start=0, step=1, limit=6
    $region2: #{tpu_custom_call.1} parent=1 // loop_pre_header
      _
    $region3: #{tpu_custom_call.1} parent=1 // loop_header
      %s12 = sphi 0, %s16
      %p13 = scmp.ge.s32.totalorder %s12, 6
      %s19 = sphi 0, %s38
      %s20 = sphi 0, %s34
      %s21 = sphi 0, %s30
      %s22 = sphi 0, %s19
      %s23 = sphi 0, %s20
      %s24 = sphi 0, %s21
      %s25 = sphi 0, %s22
      %s26 = sphi 0, %s23
      %s27 = sphi 0, %s24
      %s43 = sphi 0, %s45
      %s46 = sphi 0, %s43
      %s47 = sphi 0, %s46
      %s63 = sphi 0, %s47
      %s69 = sphi 0, %s71
      %s72 = sphi 0, %s69
      %s73 = sphi 0, %s72
      %s89 = sphi 0, %s73
      %s95 = sphi 0, %s97
      %s98 = sphi 0, %s95
      %s99 = sphi 0, %s98
      %s115 = sphi 0, %s99
      %s125 = sphi 0, %s127
      %s128 = sphi 0, %s125
      %s129 = sphi 0, %s128
      %s145 = sphi 0, %s129
    $region4: #{tpu_custom_call.1} parent=1 // loop_header_branch
      %15 = sbr.rel (%p13) target = $region8
    $region5: #{tpu_custom_call.1} parent=1 // loop_body
      %s17 = ssub.s32 %s12, 1
      %s18 = ssub.s32 %s12, 2
      %s28 = sadd.s32 1, %s21
      %p29 = scmp.ge.s32.totalorder %s28, 2
      %s30 = scalar_select %p29, 0, %s28
      %s31 = sadd.s32 1, %s20
      %s32 = scalar_select %p29, %s31, %s20
      %p33 = scmp.ge.s32.totalorder %s32, 1
      %s34 = scalar_select %p33, 0, %s32
      %s35 = sadd.s32 1, %s19
      %s36 = scalar_select %p33, %s35, %s19
      %p37 = scmp.ge.s32.totalorder %s36, 2
      %s38 = scalar_select %p37, 0, %s36
      %s39 = ssub.s32 %s19, %s38
      %s40 = ssub.s32 %s20, %s34
      %s41 = sor.u32 %s39, %s40
      %p42 = scmp.eq.s32.totalorder %s41, 0
      %s44 = sadd.s32 %s43, 1
      %s45 = scalar_select %p42, %s43, %s44
      %p48 = pneg %p42
      %p49 = scmp.eq.s32.totalorder %s12, 3
      %p50 = por %p48, %p49
      %p51 = scmp.ne.s32.totalorder %s43, %s46
      %p52 = scmp.eq.s32.totalorder %s12, 0
      %p53 = por %p51, %p52
      %p54 = scmp.ne.s32.totalorder %s43, %s46
      %p55 = scmp.eq.s32.totalorder %s17, 3
      %p56 = por %p54, %p55
      %p57 = scmp.ne.s32.totalorder %s46, %s47
      %p58 = scmp.eq.s32.totalorder %s17, 0
      %p59 = por %p57, %p58
      %p60 = scmp.ne.s32.totalorder %s46, %s47
      %p61 = scmp.eq.s32.totalorder %s18, 3
      %p62 = por %p60, %p61
      %p64 = scmp.ne.s32.totalorder %s47, %s63
      %p65 = scmp.eq.s32.totalorder %s18, 0
      %p66 = por %p64, %p65
      %s67 = ssub.s32 %s21, %s30
      %p68 = scmp.eq.s32.totalorder %s67, 0
      %s70 = sadd.s32 %s69, 1
      %s71 = scalar_select %p68, %s69, %s70
      %p74 = pneg %p68
      %p75 = scmp.eq.s32.totalorder %s12, 3
      %p76 = por %p74, %p75
      %p77 = scmp.ne.s32.totalorder %s69, %s72
      %p78 = scmp.eq.s32.totalorder %s12, 0
      %p79 = por %p77, %p78
      %p80 = scmp.ne.s32.totalorder %s69, %s72
      %p81 = scmp.eq.s32.totalorder %s17, 3
      %p82 = por %p80, %p81
      %p83 = scmp.ne.s32.totalorder %s72, %s73
      %p84 = scmp.eq.s32.totalorder %s17, 0
      %p85 = por %p83, %p84
      %p86 = scmp.ne.s32.totalorder %s72, %s73
      %p87 = scmp.eq.s32.totalorder %s18, 3
      %p88 = por %p86, %p87
      %p90 = scmp.ne.s32.totalorder %s73, %s89
      %p91 = scmp.eq.s32.totalorder %s18, 0
      %p92 = por %p90, %p91
      %s93 = ssub.s32 %s21, %s30
      %p94 = scmp.eq.s32.totalorder %s93, 0
      %s96 = sadd.s32 %s95, 1
      %s97 = scalar_select %p94, %s95, %s96
      %p100 = pneg %p94
      %p101 = scmp.eq.s32.totalorder %s12, 3
      %p102 = por %p100, %p101
      %p103 = scmp.ne.s32.totalorder %s95, %s98
      %p104 = scmp.eq.s32.totalorder %s12, 0
      %p105 = por %p103, %p104
      %p106 = scmp.ne.s32.totalorder %s95, %s98
      %p107 = scmp.eq.s32.totalorder %s17, 3
      %p108 = por %p106, %p107
      %p109 = scmp.ne.s32.totalorder %s98, %s99
      %p110 = scmp.eq.s32.totalorder %s17, 0
      %p111 = por %p109, %p110
      %p112 = scmp.ne.s32.totalorder %s98, %s99
      %p113 = scmp.eq.s32.totalorder %s18, 3
      %p114 = por %p112, %p113
      %p116 = scmp.ne.s32.totalorder %s99, %s115
      %p117 = scmp.eq.s32.totalorder %s18, 0
      %p118 = por %p116, %p117
      %s119 = ssub.s32 %s19, %s38
      %s120 = ssub.s32 %s21, %s30
      %s121 = sor.u32 %s119, %s120
      %s122 = ssub.s32 %s20, %s34
      %s123 = sor.u32 %s121, %s122
      %p124 = scmp.eq.s32.totalorder %s123, 0
      %s126 = sadd.s32 %s125, 1
      %s127 = scalar_select %p124, %s125, %s126
      %p130 = pneg %p124
      %p131 = scmp.eq.s32.totalorder %s12, 3
      %p132 = por %p130, %p131
      %p133 = scmp.ne.s32.totalorder %s125, %s128
      %p134 = scmp.eq.s32.totalorder %s12, 0
      %p135 = por %p133, %p134
      %p136 = scmp.ne.s32.totalorder %s125, %s128
      %p137 = scmp.eq.s32.totalorder %s17, 3
      %p138 = por %p136, %p137
      %p139 = scmp.ne.s32.totalorder %s128, %s129
      %p140 = scmp.eq.s32.totalorder %s17, 0
      %p141 = por %p139, %p140
      %p142 = scmp.ne.s32.totalorder %s128, %s129
      %p143 = scmp.eq.s32.totalorder %s18, 3
      %p144 = por %p142, %p143
      %p146 = scmp.ne.s32.totalorder %s129, %s145
      %p147 = scmp.eq.s32.totalorder %s18, 0
      %p148 = por %p146, %p147
      %p149 = scmp.le.s32.totalorder 1, %s12
      %p150 = scmp.lt.s32.totalorder %s12, 5
      %p151 = pnand %p149, %p150
      %p152 = pneg %p151
      // Predicated region
      $region9: #{tpu_custom_call.1} parent=5 // pred_check
        _
      $region10: #{tpu_custom_call.1} parent=5 // pred_check_branch
        %154 = sbr.rel (%p151) target = $region12
      $region11: #{tpu_custom_call.1} parent=5 // pred_region
        %s155 = ssub.s32 %s12, 1
      $region12: #{tpu_custom_call.1} parent=5 // pred_fallthru
        _
      %p156 = scmp.lt.s32.totalorder %s12, 4
      // Predicated region
      $region13: #{tpu_custom_call.1} parent=5 // pred_check
        %p157 = pneg %p156
      $region14: #{tpu_custom_call.1} parent=5 // pred_check_branch
        %159 = sbr.rel (%p157) target = $region16
      $region15: #{tpu_custom_call.1} parent=5 // pred_region
        // Predicated region
        $region17: #{tpu_custom_call.1} parent=15 // pred_check
          %p160 = pneg %p53
        $region18: #{tpu_custom_call.1} parent=15 // pred_check_branch
          %162 = sbr.rel (%p160) target = $region20
        $region19: #{tpu_custom_call.1} parent=15 // pred_region
          %p163 = scmp.lt.s32.totalorder %s19, 1
          %s164 = scalar_select %p163, %s19, 1
          %p165 = scmp.lt.s32.totalorder %s20, 0
          %s166 = scalar_select %p165, %s20, 0
          %s167 = sadd.s32 %s166, %s164
          %s168 = smul.addr %s167, 8
          %s169 = scalar_lea.vmem %s0, %s168
        $region20: #{tpu_custom_call.1} parent=15 // pred_fallthru
          _
        // Predicated region
        $region21: #{tpu_custom_call.1} parent=15 // pred_check
          %p170 = pneg %p79
        $region22: #{tpu_custom_call.1} parent=15 // pred_check_branch
          %172 = sbr.rel (%p170) target = $region24
        $region23: #{tpu_custom_call.1} parent=15 // pred_region
          %p173 = scmp.lt.s32.totalorder %s21, 1
          %s174 = scalar_select %p173, %s21, 1
          %s175 = smul.addr %s174, 4
          %s176 = smul.addr %s175, 8
          %s177 = scalar_lea.vmem %s1, %s176
        $region24: #{tpu_custom_call.1} parent=15 // pred_fallthru
          _
        // Predicated region
        $region25: #{tpu_custom_call.1} parent=15 // pred_check
          %p178 = pneg %p105
        $region26: #{tpu_custom_call.1} parent=15 // pred_check_branch
          %180 = sbr.rel (%p178) target = $region28
        $region27: #{tpu_custom_call.1} parent=15 // pred_region
          %p181 = scmp.lt.s32.totalorder %s21, 1
          %s182 = scalar_select %p181, %s21, 1
          %s183 = scalar_lea.vmem %s2, %s182
        $region28: #{tpu_custom_call.1} parent=15 // pred_fallthru
          _
      $region16: #{tpu_custom_call.1} parent=5 // pred_fallthru
        _
      %p184 = scmp.le.s32.totalorder 1, %s12
      %p185 = scmp.lt.s32.totalorder %s12, 5
      %p186 = pnand %p184, %p185
      %p187 = pneg %p186
      // Predicated region
      $region29: #{tpu_custom_call.1} parent=5 // pred_check
        _
      $region30: #{tpu_custom_call.1} parent=5 // pred_check_branch
        %189 = sbr.rel (%p186) target = $region32
      $region31: #{tpu_custom_call.1} parent=5 // pred_region
        %s190 = ssub.s32 %s12, 1
        %p191 = scmp.lt.s32.totalorder %s22, 1
        %s192 = scalar_select %p191, %s22, 1
        %p193 = scmp.lt.s32.totalorder %s23, 0
        %s194 = scalar_select %p193, %s23, 0
        %s195 = sadd.s32 %s194, %s192
        %s196 = smul.addr %s195, 8
        %s197 = scalar_lea.vmem %s0, %s196
        %p198 = pneg %p59
        %p199 = pneg %p56
        %p200 = scmp.lt.s32.totalorder %s24, 1
        %s201 = scalar_select %p200, %s24, 1
        %s202 = smul.addr %s201, 4
        %s203 = smul.addr %s202, 8
        %s204 = scalar_lea.vmem %s1, %s203
        %p205 = pneg %p85
        %p206 = pneg %p82
        %p207 = scmp.lt.s32.totalorder %s24, 1
        %s208 = scalar_select %p207, %s24, 1
        %s209 = scalar_lea.vmem %s2, %s208
        %p210 = pneg %p111
        %p211 = pneg %p108
        %p212 = pneg %p141
        %p213 = pneg %p138
        %s214 = sand.u32 %s128, 1
        %s215 = scalar_lea.sflag [#allocation3], %s214
        %s216 = sand.u32 %s128, 1
        %s217 = smul.addr %s216, 8
        %s218 = scalar_lea.vmem [#allocation2], %s217
        %p219 = scmp.lt.s32.totalorder %s22, 1
        %s220 = scalar_select %p219, %s22, 1
        %p221 = scmp.lt.s32.totalorder %s23, 0
        %s222 = scalar_select %p221, %s23, 0
        %s223 = sadd.s32 %s222, %s220
        %s224 = smul.addr %s223, 8
        %s225 = scalar_lea.vmem %s0, %s224
        %p226 = scmp.lt.s32.totalorder %s24, 1
        %s227 = scalar_select %p226, %s24, 1
        %s228 = smul.addr %s227, 4
        %s229 = smul.addr %s228, 8
        %s230 = scalar_lea.vmem %s1, %s229
        %p231 = scmp.lt.s32.totalorder %s24, 1
        %s232 = scalar_select %p231, %s24, 1
        %s233 = scalar_lea.vmem %s2, %s232
        %v234 = vld [vmem:[%s225] sm:$0xff]
        %v235 = vld [vmem:[%s230] sm:$0xff]
        %v236 = vld [vmem:[%s230 + $0x8] sm:$0xff]
        %v237 = vld [vmem:[%s230 + $0x10] sm:$0xff]
        %v238 = vld [vmem:[%s230 + $0x18] sm:$0xff]
        %v239 = vld [vmem:[%s233] sm:$0x1]
        %v241 = vlaneseq
        %v242 = vshrl.u32 %v241, 7
        %v243 = vsub.s32 0, %v242
        %v244 = vrot.slane %v239, %v243
        %vm246 = vcmask 261120
        %v248 = vsel %vm246, %v234, 0
        %250 = vmatprep.subr.mxu0 0.0
        %251 = vmatpush1.msra.mxu0 %v235
        %252 = vmatprep.subr.mxu0 0.0
        %253 = vmatpush1.msra.mxu0 %v236
        %254 = vmatprep.subr.mxu0 0.0
        %255 = vmatpush1.msra.mxu0 %v237
        %256 = vmatprep.subr.mxu0 0.0
        %257 = vmatpush1.msra.mxu0 %v238
        %258 = vmatprep.subr.mxu0 0.0
        %259 = vmatpush1.msra.mxu0 0.0
        %260 = vmatprep.subr.mxu0 0.0
        %261 = vmatpush1.msra.mxu0 0.0
        %262 = vmatprep.subr.mxu0 0.0
        %263 = vmatpush1.msra.mxu0 0.0
        %264 = vmatprep.subr.mxu0 0.0
        %265 = vmatpush1.msra.mxu0 0.0
        %266 = vmatprep.subr.mxu0 0.0
        %267 = vmatpush1.msra.mxu0 0.0
        %268 = vmatprep.subr.mxu0 0.0
        %269 = vmatpush1.msra.mxu0 0.0
        %270 = vmatprep.subr.mxu0 0.0
        %271 = vmatpush1.msra.mxu0 0.0
        %272 = vmatprep.subr.mxu0 0.0
        %273 = vmatpush1.msra.mxu0 0.0
        %274 = vmatprep.subr.mxu0 0.0
        %275 = vmatpush1.msra.mxu0 0.0
        %276 = vmatprep.subr.mxu0 0.0
        %277 = vmatpush1.msra.mxu0 0.0
        %278 = vmatprep.subr.mxu0 0.0
        %279 = vmatpush1.msra.mxu0 0.0
        %280 = vmatprep.subr.mxu0 0.0
        %281 = vmatpush1.msra.mxu0 0.0
        %282 = vmatprep.subr.mxu0 0.0
        %283 = vmatpush1.msra.mxu0 0.0
        %284 = vmatprep.subr.mxu0 0.0
        %285 = vmatpush1.msra.mxu0 0.0
        %286 = vmatprep.subr.mxu0 0.0
        %287 = vmatpush1.msra.mxu0 0.0
        %288 = vmatprep.subr.mxu0 0.0
        %289 = vmatpush1.msra.mxu0 0.0
        %290 = vmatprep.subr.mxu0 0.0
        %291 = vmatpush1.msra.mxu0 0.0
        %292 = vmatprep.subr.mxu0 0.0
        %293 = vmatpush1.msra.mxu0 0.0
        %294 = vmatprep.subr.mxu0 0.0
        %295 = vmatpush1.msra.mxu0 0.0
        %296 = vmatprep.subr.mxu0 0.0
        %297 = vmatpush1.msra.mxu0 0.0
        %298 = vmatprep.subr.mxu0 0.0
        %299 = vmatpush1.msra.mxu0 0.0
        %300 = vmatprep.subr.mxu0 0.0
        %301 = vmatpush1.msra.mxu0 0.0
        %302 = vmatprep.subr.mxu0 0.0
        %303 = vmatpush1.msra.mxu0 0.0
        %304 = vmatprep.subr.mxu0 0.0
        %305 = vmatpush1.msra.mxu0 0.0
        %306 = vmatprep.subr.mxu0 0.0
        %307 = vmatpush1.msra.mxu0 0.0
        %308 = vmatprep.subr.mxu0 0.0
        %309 = vmatpush1.msra.mxu0 0.0
        %310 = vmatprep.subr.mxu0 0.0
        %311 = vmatpush1.msra.mxu0 0.0
        %312 = vmatprep.subr.mxu0 0.0
        %313 = vmatpush1.msra.mxu0 0.0
        %314 = vmatprep.mubr.f32.mxu0 0.0
        %315 = vmatmul.mubr.f32.gmra.mrb[0].mxu0 %v248
        %v316 = vpop.f32.mrb[0].mxu0
        %v317 = vadd.f32 %v244, %v316
        %v318 = vpop.f32.mrb[0].mxu0
        %319 = vdwg.mxu0
        %vm320 = vcmask 130048
        %321 = vst.msk [vmem:[%s218] sm:$0xff] %vm320, %v317
        %s322 = sand.u32 %s128, 1
        %s323 = scalar_lea.sflag [#allocation3], %s322
        %s324 = sand.u32 %s128, 1
        %s325 = smul.addr %s324, 8
        %s326 = scalar_lea.vmem [#allocation2], %s325
        // Predicated region
        $region33: #{tpu_custom_call.1} parent=31 // pred_check
          %p327 = pneg %p138
        $region34: #{tpu_custom_call.1} parent=31 // pred_check_branch
          %329 = sbr.rel (%p327) target = $region36
        $region35: #{tpu_custom_call.1} parent=31 // pred_region
          %s331 = ssub.s32 128, 128
          %332 = vsyncadd %s323, %s331
          %s333 = sadd.s32 %s23, %s24
          %s334 = smul.addr %s22, 2
          %s335 = sadd.s32 %s333, %s334
          %s336 = smul.addr %s335, 128
          %s337 = scalar_lea.hbm %s3, %s336
          %s339 = sshll.u32 %s326, 4
          %s340 = int_to_ptr.vmem [resolvable:$true] %s339
          %342 = dma.vmem_to_hbm [thread:$0]  %s340, 128, %s337, %s323
        $region36: #{tpu_custom_call.1} parent=31 // pred_fallthru
          _
      $region32: #{tpu_custom_call.1} parent=5 // pred_fallthru
        _
      %p343 = scmp.le.s32.totalorder 2, %s12
      // Predicated region
      $region37: #{tpu_custom_call.1} parent=5 // pred_check
        %p344 = pneg %p343
      $region38: #{tpu_custom_call.1} parent=5 // pred_check_branch
        %346 = sbr.rel (%p344) target = $region40
      $region39: #{tpu_custom_call.1} parent=5 // pred_region
        %s347 = ssub.s32 %s12, 2
        // Predicated region
        $region41: #{tpu_custom_call.1} parent=39 // pred_check
          %p348 = pneg %p144
        $region42: #{tpu_custom_call.1} parent=39 // pred_check_branch
          %350 = sbr.rel (%p348) target = $region44
        $region43: #{tpu_custom_call.1} parent=39 // pred_region
          %s351 = sand.u32 %s129, 1
          %s352 = scalar_lea.sflag [#allocation3], %s351
          %s353 = sand.u32 %s129, 1
          %s354 = smul.addr %s353, 8
          %s355 = scalar_lea.vmem [#allocation2], %s354
          %356 = dma.done %s352, 128
        $region44: #{tpu_custom_call.1} parent=39 // pred_fallthru
          _
      $region40: #{tpu_custom_call.1} parent=5 // pred_fallthru
        _
    $region6: #{tpu_custom_call.1} parent=1 // loop_footer
      %s16 = sadd.s32 1, %s12
    $region7: #{tpu_custom_call.1} parent=1 // loop_footer_branch
      %11 = sbr.rel target = $region3
    $region8: #{tpu_custom_call.1} parent=1 // loop_exit
      _
    %357 = vsyncpa [#allocation3], 1
    %s358 = scalar_lea.sflag [#allocation3], 1
    %359 = vsyncpa %s358, 1

</llo_original>
